<compile_context>
chip_gen: v5e
topology: v5e:2x2
jax: 0.10.0
libtpu: 0.0.40
codegen_flags: <defaults>
</compile_context>

<pallas_src>
import functools

import jax
import jax.numpy as jnp
from jax import lax
from jax.experimental import pallas as pl
from jax.experimental.pallas import tpu as pltpu


def _round_up(x, m):
    return (x + m - 1) // m * m


def _conv3x3_kernel(x_ref, w_ref, b_ref, o_ref, *, TH, W, Cin, Cout):
    """One (batch, row-tile) per grid step.

    x_ref: (1, 1, TH+2, W+2, Cin) bf16  row tile incl. halo rows / zero-padded cols
    w_ref: (9*Cin, Cout)          bf16  conv weights flattened (ky, kx, cin) -> rows
    b_ref: (1, Cout)              f32   bias
    o_ref: (1, TH, W, Cout)       f32   output row tile (unpadded channels)
    """
    # Three dx-shifted slabs: static windows along the padded-W (sublane) axis.
    # The later dy offsets are leading-dim (vreg-row) slices and cost nothing.
    slabs = [x_ref[0, 0, :, dx:dx + W, :] for dx in range(3)]     # each (TH+2, W, Cin)

    # im2col: fold all 9 taps into the contraction axis -> ONE MXU matmul.
    # Concat order (dy major, dx, then cin) matches the weight flatten below.
    patches = jnp.concatenate(
        [slabs[dx][dy:dy + TH] for dy in range(3) for dx in range(3)],
        axis=-1)                                                  # (TH, W, 9*Cin)
    patches = patches.reshape(TH * W, 9 * Cin)

    acc = jnp.dot(patches, w_ref[...],
                  preferred_element_type=jnp.float32)             # (TH*W, Cout) f32
    out = acc + b_ref[...]                                        # f32 bias add
    o_ref[0] = out.reshape(TH, W, Cout).astype(o_ref.dtype)


def _vmem_tile_bytes(rows, cols, itemsize, sublane):
    # Footprint of a 2-D (rows, cols) slab in VMEM register tiling:
    # bf16 tiles are (16, 128), f32 tiles are (8, 128).
    return _round_up(rows, sublane) * _round_up(cols, 128) * itemsize


def _vmem_estimate(TH, W, Cin, Cout):
    in_blk = (TH + 2) * _vmem_tile_bytes(W + 2, Cin, 2, 16)
    out_blk = TH * _vmem_tile_bytes(W, Cout, 4, 8)
    w_blk = _vmem_tile_bytes(9 * Cin, Cout, 2, 16)
    b_blk = _vmem_tile_bytes(1, Cout, 4, 8)
    slabs = 3 * (TH + 2) * _vmem_tile_bytes(W, Cin, 2, 16)
    patches = _vmem_tile_bytes(TH * W, 9 * Cin, 2, 16)
    acc_tmp = 2 * _vmem_tile_bytes(TH * W, Cout, 4, 8)
    # Block buffers are double-buffered by the pipeline; temporaries are not.
    return 2 * (in_blk + out_blk + w_blk + b_blk) + slabs + patches + acc_tmp


# Per-step budget chosen so the total vmem request stays well under v7x's
# 64 MiB/TC (v5e/v6e have 128 MiB, so this is conservative there).
_VMEM_TILE_BUDGET = 24 * 1024 * 1024


def _pick_tile_h(H, W, Cin, Cout, max_th=256):
    """Largest row-tile dividing H whose VMEM footprint fits the budget."""
    for th in range(min(H, max_th), 0, -1):
        if H % th == 0 and _vmem_estimate(th, W, Cin, Cout) <= _VMEM_TILE_BUDGET:
            return th
    # Note: only reached if even TH=1 exceeds the budget (enormous W*Cin);
    # W is not tiled in this kernel.
    return 1


def key_projection_pallas(x_nchw, weight, bias):
    """x_nchw: (N, Cin, H, W); weight: (Cout, Cin, 3, 3); bias: (Cout,).
    Returns (N, Cout, H, W) float32, matching nn.Conv2d(indim, keydim, 3, padding=1)."""
    N, Cin, H, W = x_nchw.shape
    Cout = weight.shape[0]
    TH = _pick_tile_h(H, W, Cin, Cout)
    R = H // TH

    # Glue: NCHW -> NHWC, bf16 cast, spatial zero-pad by 1, then gather the R
    # overlapping TH+2-row windows so every grid step is self-contained.
    x_nhwc = jnp.transpose(x_nchw, (0, 2, 3, 1)).astype(jnp.bfloat16)
    x_pad = jnp.pad(x_nhwc, ((0, 0), (1, 1), (1, 1), (0, 0)))        # (N, H+2, W+2, Cin)
    row_idx = (jnp.arange(R) * TH)[:, None] + jnp.arange(TH + 2)[None, :]   # (R, TH+2)
    x_tiles = x_pad[:, row_idx]                                      # (N, R, TH+2, W+2, Cin)

    # Weight: (Cout, Cin, 3, 3) -> (ky, kx, cin, cout) -> (9*Cin, Cout) bf16 (no padding).
    w = jnp.transpose(weight, (2, 3, 1, 0)).reshape(9 * Cin, Cout).astype(jnp.bfloat16)
    b = bias.astype(jnp.float32).reshape(1, Cout)

    kernel = functools.partial(_conv3x3_kernel, TH=TH, W=W, Cin=Cin, Cout=Cout)

    est = _vmem_estimate(TH, W, Cin, Cout)
    # By construction est <= ~24 MiB, so this never actually clamps; the 64 MiB
    # cap just keeps the request valid on v7x (v5e/v6e have more headroom).
    vmem_limit = int(min(est * 3 // 2 + (8 << 20), 64 << 20))

    out_nhwc = pl.pallas_call(
        kernel,
        out_shape=jax.ShapeDtypeStruct((N, H, W, Cout), jnp.float32),
        grid_spec=pltpu.PrefetchScalarGridSpec(
            num_scalar_prefetch=0,
            grid=(N, R),
            in_specs=[
                # Per-(n, r) input row tile (halo included) -> small, pipelined blocks.
                pl.BlockSpec((1, 1, TH + 2, W + 2, Cin), lambda n, r: (n, r, 0, 0, 0)),
                pl.BlockSpec((9 * Cin, Cout), lambda n, r: (0, 0)),
                pl.BlockSpec((1, Cout), lambda n, r: (0, 0)),
            ],
            out_specs=pl.BlockSpec((1, TH, W, Cout), lambda n, r: (n, r, 0, 0)),
        ),
        compiler_params=pltpu.CompilerParams(
            dimension_semantics=("parallel", "parallel"),
            vmem_limit_bytes=vmem_limit),
    )(x_tiles, w, b)

    # Glue: NHWC -> NCHW (no channel-padding slice needed any more).
    return jnp.transpose(out_nhwc, (0, 3, 1, 2))


def make_params(key, indim, keydim):
    """Parameter init mirroring the PyTorch module: orthogonal_ on the
    (keydim, indim*3*3)-flattened conv weight, zero bias.
    (QR sign convention differs from torch.nn.init.orthogonal_, which only
    changes which orthogonal matrix is drawn — irrelevant to the kernel.)"""
    flat_rows, flat_cols = keydim, indim * 3 * 3
    g = jax.random.normal(key, (max(flat_rows, flat_cols), min(flat_rows, flat_cols)),
                          dtype=jnp.float32)
    q, _ = jnp.linalg.qr(g)
    q = q[:, :min(flat_rows, flat_cols)]
    if flat_rows <= flat_cols:
        w_flat = q.T[:flat_rows, :flat_cols]    # orthonormal rows
    else:
        w_flat = q[:flat_rows, :flat_cols]      # orthonormal columns
    weight = w_flat.reshape(keydim, indim, 3, 3)
    bias = jnp.zeros((keydim,), jnp.float32)
    return weight, bias


if __name__ == "__main__":
    key = jax.random.PRNGKey(0)
    k_x, k_w = jax.random.split(key)

    N, indim, keydim, H, W = 2, 4, 8, 16, 16
    x = jax.random.normal(k_x, (N, indim, H, W), dtype=jnp.float32)
    weight, bias = make_params(k_w, indim, keydim)

    out = key_projection_pallas(x, weight, bias)
    out = jax.block_until_ready(out)

    # Reference: XLA conv on the same bf16-rounded operands (the kernel feeds the
    # MXU bf16 with f32 accumulation), at HIGHEST precision so only the
    # accumulation order differs.
    xr = x.astype(jnp.bfloat16).astype(jnp.float32)
    wr = weight.astype(jnp.bfloat16).astype(jnp.float32)
    ref = lax.conv_general_dilated(
        xr, wr, window_strides=(1, 1), padding=((1, 1), (1, 1)),
        dimension_numbers=("NCHW", "OIHW", "NCHW"),
        precision=lax.Precision.HIGHEST) + bias.reshape(1, keydim, 1, 1)

    assert out.shape == (N, keydim, H, W)
    assert out.dtype == jnp.float32
    assert jnp.allclose(out, ref, atol=2e-3, rtol=2e-3)

    print("KERNEL_OK")
</pallas_src>

<mosaic_0001>
module attributes {stable_mosaic.version = 11 : i64} {
  func.func @_conv3x3_kernel(%arg0: i32, %arg1: i32, %arg2: memref<1x1x18x18x4xbf16, #tpu.memory_space<vmem>>, %arg3: memref<36x8xbf16, #tpu.memory_space<vmem>>, %arg4: memref<1x8xf32, #tpu.memory_space<vmem>>, %arg5: memref<1x16x16x8xf32, #tpu.memory_space<vmem>>) attributes {dimension_semantics = [#tpu.dimension_semantics<parallel>, #tpu.dimension_semantics<parallel>], iteration_bounds = array<i64: 2, 1>, scalar_prefetch = 0 : i64, scratch_operands = 0 : i64, tpu.core_type = #tpu.core_type<tc>, window_params = [{transform_indices = @transform_0, window_bounds = array<i64: 1, 1, 18, 18, 4>}, {pipeline_mode = #tpu.pipeline_mode<synchronous>, transform_indices = @transform_1, window_bounds = array<i64: 36, 8>}, {pipeline_mode = #tpu.pipeline_mode<synchronous>, transform_indices = @transform_2, window_bounds = array<i64: 1, 8>}, {transform_indices = @transform_3, window_bounds = array<i64: 1, 16, 16, 8>}]} {
    %c0 = arith.constant 0 : index
    %c0_0 = arith.constant 0 : index
    %c0_1 = arith.constant 0 : index
    %c0_2 = arith.constant 0 : index
    %c0_3 = arith.constant 0 : index
    %0 = vector.load %arg2[%c0, %c0_0, %c0_1, %c0_2, %c0_3] : memref<1x1x18x18x4xbf16, #tpu.memory_space<vmem>>, vector<1x1x18x16x4xbf16>
    %1 = vector.shape_cast %0 : vector<1x1x18x16x4xbf16> to vector<18x16x4xbf16>
    %c0_4 = arith.constant 0 : index
    %c0_5 = arith.constant 0 : index
    %c0_6 = arith.constant 0 : index
    %c1 = arith.constant 1 : index
    %c0_7 = arith.constant 0 : index
    %2 = vector.load %arg2[%c0_4, %c0_5, %c0_6, %c1, %c0_7] : memref<1x1x18x18x4xbf16, #tpu.memory_space<vmem>>, vector<1x1x18x16x4xbf16>
    %3 = vector.shape_cast %2 : vector<1x1x18x16x4xbf16> to vector<18x16x4xbf16>
    %c0_8 = arith.constant 0 : index
    %c0_9 = arith.constant 0 : index
    %c0_10 = arith.constant 0 : index
    %c2 = arith.constant 2 : index
    %c0_11 = arith.constant 0 : index
    %4 = vector.load %arg2[%c0_8, %c0_9, %c0_10, %c2, %c0_11] : memref<1x1x18x18x4xbf16, #tpu.memory_space<vmem>>, vector<1x1x18x16x4xbf16>
    %5 = vector.shape_cast %4 : vector<1x1x18x16x4xbf16> to vector<18x16x4xbf16>
    %6 = vector.extract_strided_slice %1 {offsets = [0, 0, 0], sizes = [16, 16, 4], strides = [1, 1, 1]} : vector<18x16x4xbf16> to vector<16x16x4xbf16>
    %7 = vector.extract_strided_slice %3 {offsets = [0, 0, 0], sizes = [16, 16, 4], strides = [1, 1, 1]} : vector<18x16x4xbf16> to vector<16x16x4xbf16>
    %8 = vector.extract_strided_slice %5 {offsets = [0, 0, 0], sizes = [16, 16, 4], strides = [1, 1, 1]} : vector<18x16x4xbf16> to vector<16x16x4xbf16>
    %9 = vector.extract_strided_slice %1 {offsets = [1, 0, 0], sizes = [16, 16, 4], strides = [1, 1, 1]} : vector<18x16x4xbf16> to vector<16x16x4xbf16>
    %10 = vector.extract_strided_slice %3 {offsets = [1, 0, 0], sizes = [16, 16, 4], strides = [1, 1, 1]} : vector<18x16x4xbf16> to vector<16x16x4xbf16>
    %11 = vector.extract_strided_slice %5 {offsets = [1, 0, 0], sizes = [16, 16, 4], strides = [1, 1, 1]} : vector<18x16x4xbf16> to vector<16x16x4xbf16>
    %12 = vector.extract_strided_slice %1 {offsets = [2, 0, 0], sizes = [16, 16, 4], strides = [1, 1, 1]} : vector<18x16x4xbf16> to vector<16x16x4xbf16>
    %13 = vector.extract_strided_slice %3 {offsets = [2, 0, 0], sizes = [16, 16, 4], strides = [1, 1, 1]} : vector<18x16x4xbf16> to vector<16x16x4xbf16>
    %14 = vector.extract_strided_slice %5 {offsets = [2, 0, 0], sizes = [16, 16, 4], strides = [1, 1, 1]} : vector<18x16x4xbf16> to vector<16x16x4xbf16>
    %15 = tpu.concatenate %6, %7, %8, %9, %10, %11, %12, %13, %14 in 2 : vector<16x16x4xbf16>, vector<16x16x4xbf16>, vector<16x16x4xbf16>, vector<16x16x4xbf16>, vector<16x16x4xbf16>, vector<16x16x4xbf16>, vector<16x16x4xbf16>, vector<16x16x4xbf16>, vector<16x16x4xbf16> -> vector<16x16x36xbf16>
    %16 = vector.shape_cast %15 : vector<16x16x36xbf16> to vector<256x36xbf16>
    %c0_12 = arith.constant 0 : index
    %c0_13 = arith.constant 0 : index
    %17 = vector.load %arg3[%c0_12, %c0_13] : memref<36x8xbf16, #tpu.memory_space<vmem>>, vector<36x8xbf16>
    %cst = arith.constant dense<0.000000e+00> : vector<256x8xf32>
    %18 = tpu.matmul %16, %17, %cst {dimension_numbers = #tpu.dot_dimension_numbers<[1], [0], [0], [1], [0, 0, 1, 1], [], []>} : vector<256x36xbf16>, vector<36x8xbf16>, vector<256x8xf32> -> vector<256x8xf32>
    %c0_14 = arith.constant 0 : index
    %c0_15 = arith.constant 0 : index
    %19 = vector.load %arg4[%c0_14, %c0_15] : memref<1x8xf32, #tpu.memory_space<vmem>>, vector<1x8xf32>
    %20 = vector.broadcast %19 : vector<1x8xf32> to vector<256x8xf32>
    %21 = arith.addf %18, %20 : vector<256x8xf32>
    %22 = vector.shape_cast %21 : vector<256x8xf32> to vector<16x16x8xf32>
    %c0_16 = arith.constant 0 : index
    %c0_17 = arith.constant 0 : index
    %c0_18 = arith.constant 0 : index
    %c0_19 = arith.constant 0 : index
    %23 = vector.load %arg5[%c0_16, %c0_17, %c0_18, %c0_19] : memref<1x16x16x8xf32, #tpu.memory_space<vmem>>, vector<1x16x16x8xf32>
    %24 = vector.shape_cast %23 : vector<1x16x16x8xf32> to vector<16x16x8xf32>
    %25 = vector.shape_cast %22 : vector<16x16x8xf32> to vector<1x16x16x8xf32>
    tpu.vector_store %arg5[%c0_16, %c0_17, %c0_18, %c0_19], %25 {strides = array<i32>} : memref<1x16x16x8xf32, #tpu.memory_space<vmem>>, vector<1x16x16x8xf32>,
    return
  }
  func.func @transform_0(%arg0: i32, %arg1: i32) -> (i32, i32, i32, i32, i32) {
    %c0_i32 = arith.constant 0 : i32
    %c0_i32_0 = arith.constant 0 : i32
    %c0_i32_1 = arith.constant 0 : i32
    %c0_i32_2 = arith.constant 0 : i32
    return %arg0, %arg1, %c0_i32, %c0_i32_0, %c0_i32_1 : i32, i32, i32, i32, i32
  }
  func.func @transform_1(%arg0: i32, %arg1: i32) -> (i32, i32) {
    %c0_i32 = arith.constant 0 : i32
    %c0_i32_0 = arith.constant 0 : i32
    %c0_i32_1 = arith.constant 0 : i32
    return %c0_i32, %c0_i32_0 : i32, i32
  }
  func.func @transform_2(%arg0: i32, %arg1: i32) -> (i32, i32) {
    %c0_i32 = arith.constant 0 : i32
    %c0_i32_0 = arith.constant 0 : i32
    %c0_i32_1 = arith.constant 0 : i32
    return %c0_i32, %c0_i32_0 : i32, i32
  }
  func.func @transform_3(%arg0: i32, %arg1: i32) -> (i32, i32, i32, i32) {
    %c0_i32 = arith.constant 0 : i32
    %c0_i32_0 = arith.constant 0 : i32
    %c0_i32_1 = arith.constant 0 : i32
    return %arg0, %arg1, %c0_i32, %c0_i32_0 : i32, i32, i32, i32
  }
}

</mosaic_0001>

<llo_original>
// kernel: tpu_custom_call.1
$region0: #{tpu_custom_call.1}
  #allocation0 [shape = 'u32[]', space=smem, size = 0x4, offset = 0x4, fixed_abs, tag = 'smem constant byte address 0x4 - core index']
  #allocation1 [shape = 'u32[72,128]{1,0:T(1,128)}', space=vmem, size = 0x9000, scoped, tag = 'internal scratch']
  %s0 = inlined_call_operand.vmem [shape: bf16[2,1,18,18,4], index: 0, kind: input, shape index: {}]
  %s1 = inlined_call_operand.vmem [shape: bf16[36,8], index: 1, kind: input, shape index: {}]
  %s2 = inlined_call_operand.vmem [shape: f32[1,8], index: 2, kind: input, shape index: {}]
  %s3 = inlined_call_operand.vmem [shape: f32[2,16,16,8], index: 3, kind: output, shape index: {}]
  %s4 = sld [smem:[#allocation0]]
  $region45: #{tpu_custom_call.1} parent=0
    _
  %s6 = ssub.s32 1, %s4
  %s7 = scalar_select 0, %s6, %s4
  loop: start=0, step=1, limit=4
  $region2: #{tpu_custom_call.1} parent=0 // loop_pre_header
    _
  $region3: #{tpu_custom_call.1} parent=0 // loop_header
    %s9 = sphi 0, %s13
    %p10 = scmp.ge.s32.totalorder %s9, 4
    %s16 = sphi 0, %s28
    %s17 = sphi 0, %s24
    %s18 = sphi 0, %s16
    %s19 = sphi 0, %s17
    %s20 = sphi 0, %s18
    %s21 = sphi 0, %s19
    %s33 = sphi 0, %s35
    %s36 = sphi 0, %s33
    %s37 = sphi 0, %s36
    %s53 = sphi 0, %s37
    %s57 = sphi 0, %s57
    %s59 = sphi 0, %s57
    %s60 = sphi 0, %s59
    %s74 = sphi 0, %s60
    %s78 = sphi 0, %s78
    %s80 = sphi 0, %s78
    %s81 = sphi 0, %s80
    %s95 = sphi 0, %s81
    %s103 = sphi 0, %s105
    %s106 = sphi 0, %s103
    %s107 = sphi 0, %s106
    %s123 = sphi 0, %s107
  $region4: #{tpu_custom_call.1} parent=0 // loop_header_branch
    %12 = sbr.rel (%p10) target = $region8
  $region5: #{tpu_custom_call.1} parent=0 // loop_body
    %s14 = ssub.s32 %s9, 1
    %s15 = ssub.s32 %s9, 2
    %s22 = sadd.s32 1, %s17
    %p23 = scmp.ge.s32.totalorder %s22, 1
    %s24 = scalar_select %p23, 0, %s22
    %s25 = sadd.s32 1, %s16
    %s26 = scalar_select %p23, %s25, %s16
    %p27 = scmp.ge.s32.totalorder %s26, 2
    %s28 = scalar_select %p27, 0, %s26
    %s29 = ssub.s32 %s16, %s28
    %s30 = ssub.s32 %s17, %s24
    %s31 = sor.u32 %s29, %s30
    %p32 = scmp.eq.s32.totalorder %s31, 0
    %s34 = sadd.s32 %s33, 1
    %s35 = scalar_select %p32, %s33, %s34
    %p38 = pneg %p32
    %p39 = scmp.eq.s32.totalorder %s9, 1
    %p40 = por %p38, %p39
    %p41 = scmp.ne.s32.totalorder %s33, %s36
    %p42 = scmp.eq.s32.totalorder %s9, 0
    %p43 = por %p41, %p42
    %p44 = scmp.ne.s32.totalorder %s33, %s36
    %p45 = scmp.eq.s32.totalorder %s14, 1
    %p46 = por %p44, %p45
    %p47 = scmp.ne.s32.totalorder %s36, %s37
    %p48 = scmp.eq.s32.totalorder %s14, 0
    %p49 = por %p47, %p48
    %p50 = scmp.ne.s32.totalorder %s36, %s37
    %p51 = scmp.eq.s32.totalorder %s15, 1
    %p52 = por %p50, %p51
    %p54 = scmp.ne.s32.totalorder %s37, %s53
    %p55 = scmp.eq.s32.totalorder %s15, 0
    %p56 = por %p54, %p55
    %s58 = sadd.s32 %s57, 1
    %p61 = scmp.eq.s32.totalorder %s9, 1
    %p62 = scmp.ne.s32.totalorder %s57, %s59
    %p63 = scmp.eq.s32.totalorder %s9, 0
    %p64 = por %p62, %p63
    %p65 = scmp.ne.s32.totalorder %s57, %s59
    %p66 = scmp.eq.s32.totalorder %s14, 1
    %p67 = por %p65, %p66
    %p68 = scmp.ne.s32.totalorder %s59, %s60
    %p69 = scmp.eq.s32.totalorder %s14, 0
    %p70 = por %p68, %p69
    %p71 = scmp.ne.s32.totalorder %s59, %s60
    %p72 = scmp.eq.s32.totalorder %s15, 1
    %p73 = por %p71, %p72
    %p75 = scmp.ne.s32.totalorder %s60, %s74
    %p76 = scmp.eq.s32.totalorder %s15, 0
    %p77 = por %p75, %p76
    %s79 = sadd.s32 %s78, 1
    %p82 = scmp.eq.s32.totalorder %s9, 1
    %p83 = scmp.ne.s32.totalorder %s78, %s80
    %p84 = scmp.eq.s32.totalorder %s9, 0
    %p85 = por %p83, %p84
    %p86 = scmp.ne.s32.totalorder %s78, %s80
    %p87 = scmp.eq.s32.totalorder %s14, 1
    %p88 = por %p86, %p87
    %p89 = scmp.ne.s32.totalorder %s80, %s81
    %p90 = scmp.eq.s32.totalorder %s14, 0
    %p91 = por %p89, %p90
    %p92 = scmp.ne.s32.totalorder %s80, %s81
    %p93 = scmp.eq.s32.totalorder %s15, 1
    %p94 = por %p92, %p93
    %p96 = scmp.ne.s32.totalorder %s81, %s95
    %p97 = scmp.eq.s32.totalorder %s15, 0
    %p98 = por %p96, %p97
    %s99 = ssub.s32 %s16, %s28
    %s100 = ssub.s32 %s17, %s24
    %s101 = sor.u32 %s99, %s100
    %p102 = scmp.eq.s32.totalorder %s101, 0
    %s104 = sadd.s32 %s103, 1
    %s105 = scalar_select %p102, %s103, %s104
    %p108 = pneg %p102
    %p109 = scmp.eq.s32.totalorder %s9, 1
    %p110 = por %p108, %p109
    %p111 = scmp.ne.s32.totalorder %s103, %s106
    %p112 = scmp.eq.s32.totalorder %s9, 0
    %p113 = por %p111, %p112
    %p114 = scmp.ne.s32.totalorder %s103, %s106
    %p115 = scmp.eq.s32.totalorder %s14, 1
    %p116 = por %p114, %p115
    %p117 = scmp.ne.s32.totalorder %s106, %s107
    %p118 = scmp.eq.s32.totalorder %s14, 0
    %p119 = por %p117, %p118
    %p120 = scmp.ne.s32.totalorder %s106, %s107
    %p121 = scmp.eq.s32.totalorder %s15, 1
    %p122 = por %p120, %p121
    %p124 = scmp.ne.s32.totalorder %s107, %s123
    %p125 = scmp.eq.s32.totalorder %s15, 0
    %p126 = por %p124, %p125
    %p127 = scmp.le.s32.totalorder 1, %s9
    %p128 = scmp.lt.s32.totalorder %s9, 3
    %p129 = pnand %p127, %p128
    %p130 = pneg %p129
    // Predicated region
    $region9: #{tpu_custom_call.1} parent=5 // pred_check
      _
    $region10: #{tpu_custom_call.1} parent=5 // pred_check_branch
      %132 = sbr.rel (%p129) target = $region12
    $region11: #{tpu_custom_call.1} parent=5 // pred_region
      %s133 = ssub.s32 %s9, 1
      // Predicated region
      $region13: #{tpu_custom_call.1} parent=11 // pred_check
        %p134 = pneg %p70
      $region14: #{tpu_custom_call.1} parent=11 // pred_check_branch
        %136 = sbr.rel (%p134) target = $region16
      $region15: #{tpu_custom_call.1} parent=11 // pred_region
        _
      $region16: #{tpu_custom_call.1} parent=11 // pred_fallthru
        _
      // Predicated region
      $region17: #{tpu_custom_call.1} parent=11 // pred_check
        %p137 = pneg %p91
      $region18: #{tpu_custom_call.1} parent=11 // pred_check_branch
        %139 = sbr.rel (%p137) target = $region20
      $region19: #{tpu_custom_call.1} parent=11 // pred_region
        _
      $region20: #{tpu_custom_call.1} parent=11 // pred_fallthru
        _
    $region12: #{tpu_custom_call.1} parent=5 // pred_fallthru
      _
    %p140 = scmp.lt.s32.totalorder %s9, 2
    // Predicated region
    $region21: #{tpu_custom_call.1} parent=5 // pred_check
      %p141 = pneg %p140
    $region22: #{tpu_custom_call.1} parent=5 // pred_check_branch
      %143 = sbr.rel (%p141) target = $region24
    $region23: #{tpu_custom_call.1} parent=5 // pred_region
      // Predicated region
      $region25: #{tpu_custom_call.1} parent=23 // pred_check
        %p144 = pneg %p43
      $region26: #{tpu_custom_call.1} parent=23 // pred_check_branch
        %146 = sbr.rel (%p144) target = $region28
      $region27: #{tpu_custom_call.1} parent=23 // pred_region
        %p147 = scmp.lt.s32.totalorder %s16, 1
        %s148 = scalar_select %p147, %s16, 1
        %p149 = scmp.lt.s32.totalorder %s17, 0
        %s150 = scalar_select %p149, %s17, 0
        %s151 = smul.addr %s150, 54
        %s152 = smul.addr %s148, 54
        %s153 = sadd.s32 %s151, %s152
        %s154 = smul.addr %s153, 4
        %s155 = scalar_lea.vmem %s0, %s154
      $region28: #{tpu_custom_call.1} parent=23 // pred_fallthru
        _
    $region24: #{tpu_custom_call.1} parent=5 // pred_fallthru
      _
    %p156 = scmp.le.s32.totalorder 1, %s9
    %p157 = scmp.lt.s32.totalorder %s9, 3
    %p158 = pnand %p156, %p157
    %p159 = pneg %p158
    // Predicated region
    $region29: #{tpu_custom_call.1} parent=5 // pred_check
      _
    $region30: #{tpu_custom_call.1} parent=5 // pred_check_branch
      %161 = sbr.rel (%p158) target = $region32
    $region31: #{tpu_custom_call.1} parent=5 // pred_region
      %s162 = ssub.s32 %s9, 1
      %p163 = scmp.lt.s32.totalorder %s18, 1
      %s164 = scalar_select %p163, %s18, 1
      %p165 = scmp.lt.s32.totalorder %s19, 0
      %s166 = scalar_select %p165, %s19, 0
      %s167 = smul.addr %s166, 54
      %s168 = smul.addr %s164, 54
      %s169 = sadd.s32 %s167, %s168
      %s170 = smul.addr %s169, 4
      %s171 = scalar_lea.vmem %s0, %s170
      %p172 = pneg %p49
      %p173 = pneg %p46
      %p174 = pneg %p70
      %p175 = pneg %p67
      %p176 = pneg %p91
      %p177 = pneg %p88
      %p178 = pneg %p119
      %p179 = pneg %p116
      %s180 = smul.u32 16, %s19
      %p181 = scmp.lt.s32.totalorder %s18, 1
      %s182 = scalar_select %p181, %s18, 1
      %p183 = scmp.lt.s32.totalorder %s180, 15
      %s184 = scalar_select %p183, %s180, 15
      %s185 = smul.addr %s184, 2
      %s186 = smul.addr %s182, 32
      %s187 = sadd.s32 %s185, %s186
      %s188 = smul.addr %s187, 8
      %s189 = scalar_lea.vmem %s3, %s188
      %p190 = scmp.lt.s32.totalorder %s18, 1
      %s191 = scalar_select %p190, %s18, 1
      %p192 = scmp.lt.s32.totalorder %s19, 0
      %s193 = scalar_select %p192, %s19, 0
      %s194 = smul.addr %s193, 54
      %s195 = smul.addr %s191, 54
      %s196 = sadd.s32 %s194, %s195
      %s197 = smul.addr %s196, 4
      %s198 = scalar_lea.vmem %s0, %s197
      %s199 = smul.u32 16, %s19
      %p200 = scmp.lt.s32.totalorder %s18, 1
      %s201 = scalar_select %p200, %s18, 1
      %p202 = scmp.lt.s32.totalorder %s199, 15
      %s203 = scalar_select %p202, %s199, 15
      %s204 = smul.addr %s203, 2
      %s205 = smul.addr %s201, 32
      %s206 = sadd.s32 %s204, %s205
      %s207 = smul.addr %s206, 8
      %s208 = scalar_lea.vmem %s3, %s207
      %s209 = smul.u32 16, %s19
      %v211 = vld [vmem:[%s198] sm:$0xf]
      %v212 = vld [vmem:[%s198 + $0x4] sm:$0xf]
      %v213 = vld [vmem:[%s198 + $0xc] sm:$0xf]
      %v214 = vld [vmem:[%s198 + $0x10] sm:$0xf]
      %v215 = vld [vmem:[%s198 + $0x18] sm:$0xf]
      %v216 = vld [vmem:[%s198 + $0x1c] sm:$0xf]
      %v217 = vld [vmem:[%s198 + $0x24] sm:$0xf]
      %v218 = vld [vmem:[%s198 + $0x28] sm:$0xf]
      %v219 = vld [vmem:[%s198 + $0x30] sm:$0xf]
      %v220 = vld [vmem:[%s198 + $0x34] sm:$0xf]
      %v221 = vld [vmem:[%s198 + $0x3c] sm:$0xf]
      %v222 = vld [vmem:[%s198 + $0x40] sm:$0xf]
      %v223 = vld [vmem:[%s198 + $0x48] sm:$0xf]
      %v224 = vld [vmem:[%s198 + $0x4c] sm:$0xf]
      %v225 = vld [vmem:[%s198 + $0x54] sm:$0xf]
      %v226 = vld [vmem:[%s198 + $0x58] sm:$0xf]
      %v227 = vld [vmem:[%s198 + $0x60] sm:$0xf]
      %v228 = vld [vmem:[%s198 + $0x64] sm:$0xf]
      %v229 = vld [vmem:[%s198 + $0x6c] sm:$0xf]
      %v230 = vld [vmem:[%s198 + $0x70] sm:$0xf]
      %v231 = vld [vmem:[%s198 + $0x78] sm:$0xf]
      %v232 = vld [vmem:[%s198 + $0x7c] sm:$0xf]
      %v233 = vld [vmem:[%s198 + $0x84] sm:$0xf]
      %v234 = vld [vmem:[%s198 + $0x88] sm:$0xf]
      %v235 = vld [vmem:[%s198 + $0x90] sm:$0xf]
      %v236 = vld [vmem:[%s198 + $0x94] sm:$0xf]
      %v237 = vld [vmem:[%s198 + $0x9c] sm:$0xf]
      %v238 = vld [vmem:[%s198 + $0xa0] sm:$0xf]
      %v239 = vld [vmem:[%s198 + $0xa8] sm:$0xf]
      %v240 = vld [vmem:[%s198 + $0xac] sm:$0xf]
      %v241 = vld [vmem:[%s198 + $0xb4] sm:$0xf]
      %v242 = vld [vmem:[%s198 + $0xb8] sm:$0xf]
      %v243 = vld [vmem:[%s198 + $0xc0] sm:$0xf]
      %v244 = vld [vmem:[%s198 + $0xc4] sm:$0xf]
      %v245 = vld [vmem:[%s198 + $0xcc] sm:$0xf]
      %v246 = vld [vmem:[%s198 + $0xd0] sm:$0xf]
      %v247 = vld [vmem:[%s198 + $0x8] sm:$0x1]
      %v248 = vld [vmem:[%s198 + $0x14] sm:$0x1]
      %v249 = vld [vmem:[%s198 + $0x20] sm:$0x1]
      %v250 = vld [vmem:[%s198 + $0x2c] sm:$0x1]
      %v251 = vld [vmem:[%s198 + $0x38] sm:$0x1]
      %v252 = vld [vmem:[%s198 + $0x44] sm:$0x1]
      %v253 = vld [vmem:[%s198 + $0x50] sm:$0x1]
      %v254 = vld [vmem:[%s198 + $0x5c] sm:$0x1]
      %v255 = vld [vmem:[%s198 + $0x68] sm:$0x1]
      %v256 = vld [vmem:[%s198 + $0x74] sm:$0x1]
      %v257 = vld [vmem:[%s198 + $0x80] sm:$0x1]
      %v258 = vld [vmem:[%s198 + $0x8c] sm:$0x1]
      %v259 = vld [vmem:[%s198 + $0x98] sm:$0x1]
      %v260 = vld [vmem:[%s198 + $0xa4] sm:$0x1]
      %v261 = vld [vmem:[%s198 + $0xb0] sm:$0x1]
      %v262 = vld [vmem:[%s198 + $0xbc] sm:$0x1]
      %v263 = vld [vmem:[%s198 + $0xc8] sm:$0x1]
      %v264 = vld [vmem:[%s198 + $0xd4] sm:$0x1]
      %v265 = vld [vmem:[%s198] sm:$0xe]
      %v266 = vld [vmem:[%s198 + $0xc] sm:$0xe]
      %v267 = vld [vmem:[%s198 + $0x18] sm:$0xe]
      %v268 = vld [vmem:[%s198 + $0x24] sm:$0xe]
      %v269 = vld [vmem:[%s198 + $0x30] sm:$0xe]
      %v270 = vld [vmem:[%s198 + $0x3c] sm:$0xe]
      %v271 = vld [vmem:[%s198 + $0x48] sm:$0xe]
      %v272 = vld [vmem:[%s198 + $0x54] sm:$0xe]
      %v273 = vld [vmem:[%s198 + $0x60] sm:$0xe]
      %v274 = vld [vmem:[%s198 + $0x6c] sm:$0xe]
      %v275 = vld [vmem:[%s198 + $0x78] sm:$0xe]
      %v276 = vld [vmem:[%s198 + $0x84] sm:$0xe]
      %v277 = vld [vmem:[%s198 + $0x90] sm:$0xe]
      %v278 = vld [vmem:[%s198 + $0x9c] sm:$0xe]
      %v279 = vld [vmem:[%s198 + $0xa8] sm:$0xe]
      %v280 = vld [vmem:[%s198 + $0xb4] sm:$0xe]
      %v281 = vld [vmem:[%s198 + $0xc0] sm:$0xe]
      %v282 = vld [vmem:[%s198 + $0xcc] sm:$0xe]
      %v315 = vunpack.c.l.b16 %v211
      %v316 = vunpack.c.l.b16 %v212
      %v317 = vunpack.c.l.b16 %v213
      %v318 = vunpack.c.l.b16 %v214
      %v319 = vunpack.c.l.b16 %v215
      %v320 = vunpack.c.l.b16 %v216
      %v321 = vunpack.c.l.b16 %v217
      %v322 = vunpack.c.l.b16 %v218
      %v323 = vunpack.c.l.b16 %v219
      %v324 = vunpack.c.l.b16 %v220
      %v325 = vunpack.c.l.b16 %v221
      %v326 = vunpack.c.l.b16 %v222
      %v327 = vunpack.c.l.b16 %v223
      %v328 = vunpack.c.l.b16 %v224
      %v329 = vunpack.c.l.b16 %v225
      %v330 = vunpack.c.l.b16 %v226
      %v331 = vunpack.c.l.b16 %v227
      %v332 = vunpack.c.l.b16 %v228
      %v333 = vunpack.c.l.b16 %v229
      %v334 = vunpack.c.l.b16 %v230
      %v335 = vunpack.c.l.b16 %v231
      %v336 = vunpack.c.l.b16 %v232
      %v337 = vunpack.c.l.b16 %v233
      %v338 = vunpack.c.l.b16 %v234
      %v339 = vunpack.c.l.b16 %v235
      %v340 = vunpack.c.l.b16 %v236
      %v341 = vunpack.c.l.b16 %v237
      %v342 = vunpack.c.l.b16 %v238
      %v343 = vunpack.c.l.b16 %v239
      %v344 = vunpack.c.l.b16 %v240
      %v345 = vunpack.c.l.b16 %v241
      %v346 = vunpack.c.l.b16 %v242
      %v347 = vpack.c.b16 %v316, %v315
      %v348 = vpack.c.b16 %v318, %v317
      %v349 = vpack.c.b16 %v320, %v319
      %v350 = vpack.c.b16 %v322, %v321
      %v351 = vpack.c.b16 %v324, %v323
      %v352 = vpack.c.b16 %v326, %v325
      %v353 = vpack.c.b16 %v328, %v327
      %v354 = vpack.c.b16 %v330, %v329
      %v355 = vpack.c.b16 %v332, %v331
      %v356 = vpack.c.b16 %v334, %v333
      %v357 = vpack.c.b16 %v336, %v335
      %v358 = vpack.c.b16 %v338, %v337
      %v359 = vpack.c.b16 %v340, %v339
      %v360 = vpack.c.b16 %v342, %v341
      %v361 = vpack.c.b16 %v344, %v343
      %v362 = vpack.c.b16 %v346, %v345
      %v379 = vunpack.c.l.b16 %v247
      %v380 = vunpack.c.l.b16 %v248
      %v381 = vunpack.c.l.b16 %v249
      %v382 = vunpack.c.l.b16 %v250
      %v383 = vunpack.c.l.b16 %v251
      %v384 = vunpack.c.l.b16 %v252
      %v385 = vunpack.c.l.b16 %v253
      %v386 = vunpack.c.l.b16 %v254
      %v387 = vunpack.c.l.b16 %v255
      %v388 = vunpack.c.l.b16 %v256
      %v389 = vunpack.c.l.b16 %v257
      %v390 = vunpack.c.l.b16 %v258
      %v391 = vunpack.c.l.b16 %v259
      %v392 = vunpack.c.l.b16 %v260
      %v393 = vunpack.c.l.b16 %v261
      %v394 = vunpack.c.l.b16 %v262
      %v395 = vpack.c.b16 %v379, %v379
      %v396 = vpack.c.b16 %v380, %v380
      %v397 = vpack.c.b16 %v381, %v381
      %v398 = vpack.c.b16 %v382, %v382
      %v399 = vpack.c.b16 %v383, %v383
      %v400 = vpack.c.b16 %v384, %v384
      %v401 = vpack.c.b16 %v385, %v385
      %v402 = vpack.c.b16 %v386, %v386
      %v403 = vpack.c.b16 %v387, %v387
      %v404 = vpack.c.b16 %v388, %v388
      %v405 = vpack.c.b16 %v389, %v389
      %v406 = vpack.c.b16 %v390, %v390
      %v407 = vpack.c.b16 %v391, %v391
      %v408 = vpack.c.b16 %v392, %v392
      %v409 = vpack.c.b16 %v393, %v393
      %v410 = vpack.c.b16 %v394, %v394
      %vm411 = vsmask.f32 7424
      %v413 = vshrl.u32 %v347, 16
      %v415 = vshll.u32 %v347, 16
      %v417 = vrot.slane %v415, 1
      %v418 = vor.u32 %v413, %v417
      %v420 = vshll.u32 %v395, 16
      %v422 = vrot.slane %v420, 1
      %v423 = vsel %vm411, %v418, %v422
      %v425 = vshrl.u32 %v348, 16
      %v427 = vshll.u32 %v348, 16
      %v429 = vrot.slane %v427, 1
      %v430 = vor.u32 %v425, %v429
      %v432 = vshll.u32 %v396, 16
      %v434 = vrot.slane %v432, 1
      %v435 = vsel %vm411, %v430, %v434
      %v437 = vshrl.u32 %v349, 16
      %v439 = vshll.u32 %v349, 16
      %v441 = vrot.slane %v439, 1
      %v442 = vor.u32 %v437, %v441
      %v444 = vshll.u32 %v397, 16
      %v446 = vrot.slane %v444, 1
      %v447 = vsel %vm411, %v442, %v446
      %v449 = vshrl.u32 %v350, 16
      %v451 = vshll.u32 %v350, 16
      %v453 = vrot.slane %v451, 1
      %v454 = vor.u32 %v449, %v453
      %v456 = vshll.u32 %v398, 16
      %v458 = vrot.slane %v456, 1
      %v459 = vsel %vm411, %v454, %v458
      %v461 = vshrl.u32 %v351, 16
      %v463 = vshll.u32 %v351, 16
      %v465 = vrot.slane %v463, 1
      %v466 = vor.u32 %v461, %v465
      %v468 = vshll.u32 %v399, 16
      %v470 = vrot.slane %v468, 1
      %v471 = vsel %vm411, %v466, %v470
      %v473 = vshrl.u32 %v352, 16
      %v475 = vshll.u32 %v352, 16
      %v477 = vrot.slane %v475, 1
      %v478 = vor.u32 %v473, %v477
      %v480 = vshll.u32 %v400, 16
      %v482 = vrot.slane %v480, 1
      %v483 = vsel %vm411, %v478, %v482
      %v485 = vshrl.u32 %v353, 16
      %v487 = vshll.u32 %v353, 16
      %v489 = vrot.slane %v487, 1
      %v490 = vor.u32 %v485, %v489
      %v492 = vshll.u32 %v401, 16
      %v494 = vrot.slane %v492, 1
      %v495 = vsel %vm411, %v490, %v494
      %v497 = vshrl.u32 %v354, 16
      %v499 = vshll.u32 %v354, 16
      %v501 = vrot.slane %v499, 1
      %v502 = vor.u32 %v497, %v501
      %v504 = vshll.u32 %v402, 16
      %v506 = vrot.slane %v504, 1
      %v507 = vsel %vm411, %v502, %v506
      %v509 = vshrl.u32 %v355, 16
      %v511 = vshll.u32 %v355, 16
      %v513 = vrot.slane %v511, 1
      %v514 = vor.u32 %v509, %v513
      %v516 = vshll.u32 %v403, 16
      %v518 = vrot.slane %v516, 1
      %v519 = vsel %vm411, %v514, %v518
      %v521 = vshrl.u32 %v356, 16
      %v523 = vshll.u32 %v356, 16
      %v525 = vrot.slane %v523, 1
      %v526 = vor.u32 %v521, %v525
      %v528 = vshll.u32 %v404, 16
      %v530 = vrot.slane %v528, 1
      %v531 = vsel %vm411, %v526, %v530
      %v533 = vshrl.u32 %v357, 16
      %v535 = vshll.u32 %v357, 16
      %v537 = vrot.slane %v535, 1
      %v538 = vor.u32 %v533, %v537
      %v540 = vshll.u32 %v405, 16
      %v542 = vrot.slane %v540, 1
      %v543 = vsel %vm411, %v538, %v542
      %v545 = vshrl.u32 %v358, 16
      %v547 = vshll.u32 %v358, 16
      %v549 = vrot.slane %v547, 1
      %v550 = vor.u32 %v545, %v549
      %v552 = vshll.u32 %v406, 16
      %v554 = vrot.slane %v552, 1
      %v555 = vsel %vm411, %v550, %v554
      %v557 = vshrl.u32 %v359, 16
      %v559 = vshll.u32 %v359, 16
      %v561 = vrot.slane %v559, 1
      %v562 = vor.u32 %v557, %v561
      %v564 = vshll.u32 %v407, 16
      %v566 = vrot.slane %v564, 1
      %v567 = vsel %vm411, %v562, %v566
      %v569 = vshrl.u32 %v360, 16
      %v571 = vshll.u32 %v360, 16
      %v573 = vrot.slane %v571, 1
      %v574 = vor.u32 %v569, %v573
      %v576 = vshll.u32 %v408, 16
      %v578 = vrot.slane %v576, 1
      %v579 = vsel %vm411, %v574, %v578
      %v581 = vshrl.u32 %v361, 16
      %v583 = vshll.u32 %v361, 16
      %v585 = vrot.slane %v583, 1
      %v586 = vor.u32 %v581, %v585
      %v588 = vshll.u32 %v409, 16
      %v590 = vrot.slane %v588, 1
      %v591 = vsel %vm411, %v586, %v590
      %v593 = vshrl.u32 %v362, 16
      %v595 = vshll.u32 %v362, 16
      %v597 = vrot.slane %v595, 1
      %v598 = vor.u32 %v593, %v597
      %v600 = vshll.u32 %v410, 16
      %v602 = vrot.slane %v600, 1
      %v603 = vsel %vm411, %v598, %v602
      %604 = vrot.lane.b32.xlu0 %v423, 4
      %v605 = vpop.permute.xlu0 %604
      %606 = vrot.lane.b32.xlu0 %v435, 4
      %v607 = vpop.permute.xlu0 %606
      %608 = vrot.lane.b32.xlu0 %v447, 4
      %v609 = vpop.permute.xlu0 %608
      %610 = vrot.lane.b32.xlu0 %v459, 4
      %v611 = vpop.permute.xlu0 %610
      %612 = vrot.lane.b32.xlu0 %v471, 4
      %v613 = vpop.permute.xlu0 %612
      %614 = vrot.lane.b32.xlu0 %v483, 4
      %v615 = vpop.permute.xlu0 %614
      %616 = vrot.lane.b32.xlu0 %v495, 4
      %v617 = vpop.permute.xlu0 %616
      %618 = vrot.lane.b32.xlu0 %v507, 4
      %v619 = vpop.permute.xlu0 %618
      %620 = vrot.lane.b32.xlu0 %v519, 4
      %v621 = vpop.permute.xlu0 %620
      %622 = vrot.lane.b32.xlu0 %v531, 4
      %v623 = vpop.permute.xlu0 %622
      %624 = vrot.lane.b32.xlu0 %v543, 4
      %v625 = vpop.permute.xlu0 %624
      %626 = vrot.lane.b32.xlu0 %v555, 4
      %v627 = vpop.permute.xlu0 %626
      %628 = vrot.lane.b32.xlu0 %v567, 4
      %v629 = vpop.permute.xlu0 %628
      %630 = vrot.lane.b32.xlu0 %v579, 4
      %v631 = vpop.permute.xlu0 %630
      %632 = vrot.lane.b32.xlu0 %v591, 4
      %v633 = vpop.permute.xlu0 %632
      %634 = vrot.lane.b32.xlu0 %v603, 4
      %v635 = vpop.permute.xlu0 %634
      %v652 = vunpack.c.l.b16 %v265
      %v653 = vunpack.c.l.b16 %v266
      %v654 = vunpack.c.l.b16 %v267
      %v655 = vunpack.c.l.b16 %v268
      %v656 = vunpack.c.l.b16 %v269
      %v657 = vunpack.c.l.b16 %v270
      %v658 = vunpack.c.l.b16 %v271
      %v659 = vunpack.c.l.b16 %v272
      %v660 = vunpack.c.l.b16 %v273
      %v661 = vunpack.c.l.b16 %v274
      %v662 = vunpack.c.l.b16 %v275
      %v663 = vunpack.c.l.b16 %v276
      %v664 = vunpack.c.l.b16 %v277
      %v665 = vunpack.c.l.b16 %v278
      %v666 = vunpack.c.l.b16 %v279
      %v667 = vunpack.c.l.b16 %v280
      %v668 = vpack.c.b16 %v316, %v652
      %v669 = vpack.c.b16 %v318, %v653
      %v670 = vpack.c.b16 %v320, %v654
      %v671 = vpack.c.b16 %v322, %v655
      %v672 = vpack.c.b16 %v324, %v656
      %v673 = vpack.c.b16 %v326, %v657
      %v674 = vpack.c.b16 %v328, %v658
      %v675 = vpack.c.b16 %v330, %v659
      %v676 = vpack.c.b16 %v332, %v660
      %v677 = vpack.c.b16 %v334, %v661
      %v678 = vpack.c.b16 %v336, %v662
      %v679 = vpack.c.b16 %v338, %v663
      %v680 = vpack.c.b16 %v340, %v664
      %v681 = vpack.c.b16 %v342, %v665
      %v682 = vpack.c.b16 %v344, %v666
      %v683 = vpack.c.b16 %v346, %v667
      %vm684 = vcmask 1046528
      %v685 = vrot.slane %v668, 1
      %v686 = vrot.slane %v395, 1
      %v687 = vsel %vm684, %v685, %v686
      %v688 = vrot.slane %v669, 1
      %v689 = vrot.slane %v396, 1
      %v690 = vsel %vm684, %v688, %v689
      %v691 = vrot.slane %v670, 1
      %v692 = vrot.slane %v397, 1
      %v693 = vsel %vm684, %v691, %v692
      %v694 = vrot.slane %v671, 1
      %v695 = vrot.slane %v398, 1
      %v696 = vsel %vm684, %v694, %v695
      %v697 = vrot.slane %v672, 1
      %v698 = vrot.slane %v399, 1
      %v699 = vsel %vm684, %v697, %v698
      %v700 = vrot.slane %v673, 1
      %v701 = vrot.slane %v400, 1
      %v702 = vsel %vm684, %v700, %v701
      %v703 = vrot.slane %v674, 1
      %v704 = vrot.slane %v401, 1
      %v705 = vsel %vm684, %v703, %v704
      %v706 = vrot.slane %v675, 1
      %v707 = vrot.slane %v402, 1
      %v708 = vsel %vm684, %v706, %v707
      %v709 = vrot.slane %v676, 1
      %v710 = vrot.slane %v403, 1
      %v711 = vsel %vm684, %v709, %v710
      %v712 = vrot.slane %v677, 1
      %v713 = vrot.slane %v404, 1
      %v714 = vsel %vm684, %v712, %v713
      %v715 = vrot.slane %v678, 1
      %v716 = vrot.slane %v405, 1
      %v717 = vsel %vm684, %v715, %v716
      %v718 = vrot.slane %v679, 1
      %v719 = vrot.slane %v406, 1
      %v720 = vsel %vm684, %v718, %v719
      %v721 = vrot.slane %v680, 1
      %v722 = vrot.slane %v407, 1
      %v723 = vsel %vm684, %v721, %v722
      %v724 = vrot.slane %v681, 1
      %v725 = vrot.slane %v408, 1
      %v726 = vsel %vm684, %v724, %v725
      %v727 = vrot.slane %v682, 1
      %v728 = vrot.slane %v409, 1
      %v729 = vsel %vm684, %v727, %v728
      %v730 = vrot.slane %v683, 1
      %v731 = vrot.slane %v410, 1
      %v732 = vsel %vm684, %v730, %v731
      %733 = vrot.lane.b32.xlu0 %v687, 8
      %v734 = vpop.permute.xlu0 %733
      %735 = vrot.lane.b32.xlu0 %v690, 8
      %v736 = vpop.permute.xlu0 %735
      %737 = vrot.lane.b32.xlu0 %v693, 8
      %v738 = vpop.permute.xlu0 %737
      %739 = vrot.lane.b32.xlu0 %v696, 8
      %v740 = vpop.permute.xlu0 %739
      %741 = vrot.lane.b32.xlu0 %v699, 8
      %v742 = vpop.permute.xlu0 %741
      %743 = vrot.lane.b32.xlu0 %v702, 8
      %v744 = vpop.permute.xlu0 %743
      %745 = vrot.lane.b32.xlu0 %v705, 8
      %v746 = vpop.permute.xlu0 %745
      %747 = vrot.lane.b32.xlu0 %v708, 8
      %v748 = vpop.permute.xlu0 %747
      %749 = vrot.lane.b32.xlu0 %v711, 8
      %v750 = vpop.permute.xlu0 %749
      %751 = vrot.lane.b32.xlu0 %v714, 8
      %v752 = vpop.permute.xlu0 %751
      %753 = vrot.lane.b32.xlu0 %v717, 8
      %v754 = vpop.permute.xlu0 %753
      %755 = vrot.lane.b32.xlu0 %v720, 8
      %v756 = vpop.permute.xlu0 %755
      %757 = vrot.lane.b32.xlu0 %v723, 8
      %v758 = vpop.permute.xlu0 %757
      %759 = vrot.lane.b32.xlu0 %v726, 8
      %v760 = vpop.permute.xlu0 %759
      %761 = vrot.lane.b32.xlu0 %v729, 8
      %v762 = vpop.permute.xlu0 %761
      %763 = vrot.lane.b32.xlu0 %v732, 8
      %v764 = vpop.permute.xlu0 %763
      %v767 = vunpack.c.l.b16 %v243
      %v768 = vunpack.c.l.b16 %v244
      %v769 = vpack.c.b16 %v768, %v767
      %770 = vrot.lane.b32.xlu0 %v348, 12
      %v771 = vpop.permute.xlu0 %770
      %772 = vrot.lane.b32.xlu0 %v349, 12
      %v773 = vpop.permute.xlu0 %772
      %774 = vrot.lane.b32.xlu0 %v350, 12
      %v775 = vpop.permute.xlu0 %774
      %776 = vrot.lane.b32.xlu0 %v351, 12
      %v777 = vpop.permute.xlu0 %776
      %778 = vrot.lane.b32.xlu0 %v352, 12
      %v779 = vpop.permute.xlu0 %778
      %780 = vrot.lane.b32.xlu0 %v353, 12
      %v781 = vpop.permute.xlu0 %780
      %782 = vrot.lane.b32.xlu0 %v354, 12
      %v783 = vpop.permute.xlu0 %782
      %784 = vrot.lane.b32.xlu0 %v355, 12
      %v785 = vpop.permute.xlu0 %784
      %786 = vrot.lane.b32.xlu0 %v356, 12
      %v787 = vpop.permute.xlu0 %786
      %788 = vrot.lane.b32.xlu0 %v357, 12
      %v789 = vpop.permute.xlu0 %788
      %790 = vrot.lane.b32.xlu0 %v358, 12
      %v791 = vpop.permute.xlu0 %790
      %792 = vrot.lane.b32.xlu0 %v359, 12
      %v793 = vpop.permute.xlu0 %792
      %794 = vrot.lane.b32.xlu0 %v360, 12
      %v795 = vpop.permute.xlu0 %794
      %796 = vrot.lane.b32.xlu0 %v361, 12
      %v797 = vpop.permute.xlu0 %796
      %798 = vrot.lane.b32.xlu0 %v362, 12
      %v799 = vpop.permute.xlu0 %798
      %800 = vrot.lane.b32.xlu0 %v769, 12
      %v801 = vpop.permute.xlu0 %800
      %v803 = vunpack.c.l.b16 %v263
      %v804 = vpack.c.b16 %v803, %v803
      %v806 = vshrl.u32 %v769, 16
      %v808 = vshll.u32 %v769, 16
      %v810 = vrot.slane %v808, 1
      %v811 = vor.u32 %v806, %v810
      %v813 = vshll.u32 %v804, 16
      %v815 = vrot.slane %v813, 1
      %v816 = vsel %vm411, %v811, %v815
      %817 = vrot.lane.b32.xlu0 %v435, 16
      %v818 = vpop.permute.xlu0 %817
      %819 = vrot.lane.b32.xlu0 %v447, 16
      %v820 = vpop.permute.xlu0 %819
      %821 = vrot.lane.b32.xlu0 %v459, 16
      %v822 = vpop.permute.xlu0 %821
      %823 = vrot.lane.b32.xlu0 %v471, 16
      %v824 = vpop.permute.xlu0 %823
      %825 = vrot.lane.b32.xlu0 %v483, 16
      %v826 = vpop.permute.xlu0 %825
      %827 = vrot.lane.b32.xlu0 %v495, 16
      %v828 = vpop.permute.xlu0 %827
      %829 = vrot.lane.b32.xlu0 %v507, 16
      %v830 = vpop.permute.xlu0 %829
      %831 = vrot.lane.b32.xlu0 %v519, 16
      %v832 = vpop.permute.xlu0 %831
      %833 = vrot.lane.b32.xlu0 %v531, 16
      %v834 = vpop.permute.xlu0 %833
      %835 = vrot.lane.b32.xlu0 %v543, 16
      %v836 = vpop.permute.xlu0 %835
      %837 = vrot.lane.b32.xlu0 %v555, 16
      %v838 = vpop.permute.xlu0 %837
      %839 = vrot.lane.b32.xlu0 %v567, 16
      %v840 = vpop.permute.xlu0 %839
      %841 = vrot.lane.b32.xlu0 %v579, 16
      %v842 = vpop.permute.xlu0 %841
      %843 = vrot.lane.b32.xlu0 %v591, 16
      %v844 = vpop.permute.xlu0 %843
      %845 = vrot.lane.b32.xlu0 %v603, 16
      %v846 = vpop.permute.xlu0 %845
      %847 = vrot.lane.b32.xlu0 %v816, 16
      %v848 = vpop.permute.xlu0 %847
      %v850 = vunpack.c.l.b16 %v281
      %v851 = vpack.c.b16 %v768, %v850
      %v852 = vrot.slane %v851, 1
      %v853 = vrot.slane %v804, 1
      %v854 = vsel %vm684, %v852, %v853
      %855 = vrot.lane.b32.xlu0 %v690, 20
      %v856 = vpop.permute.xlu0 %855
      %857 = vrot.lane.b32.xlu0 %v693, 20
      %v858 = vpop.permute.xlu0 %857
      %859 = vrot.lane.b32.xlu0 %v696, 20
      %v860 = vpop.permute.xlu0 %859
      %861 = vrot.lane.b32.xlu0 %v699, 20
      %v862 = vpop.permute.xlu0 %861
      %863 = vrot.lane.b32.xlu0 %v702, 20
      %v864 = vpop.permute.xlu0 %863
      %865 = vrot.lane.b32.xlu0 %v705, 20
      %v866 = vpop.permute.xlu0 %865
      %867 = vrot.lane.b32.xlu0 %v708, 20
      %v868 = vpop.permute.xlu0 %867
      %869 = vrot.lane.b32.xlu0 %v711, 20
      %v870 = vpop.permute.xlu0 %869
      %871 = vrot.lane.b32.xlu0 %v714, 20
      %v872 = vpop.permute.xlu0 %871
      %873 = vrot.lane.b32.xlu0 %v717, 20
      %v874 = vpop.permute.xlu0 %873
      %875 = vrot.lane.b32.xlu0 %v720, 20
      %v876 = vpop.permute.xlu0 %875
      %877 = vrot.lane.b32.xlu0 %v723, 20
      %v878 = vpop.permute.xlu0 %877
      %879 = vrot.lane.b32.xlu0 %v726, 20
      %v880 = vpop.permute.xlu0 %879
      %881 = vrot.lane.b32.xlu0 %v729, 20
      %v882 = vpop.permute.xlu0 %881
      %883 = vrot.lane.b32.xlu0 %v732, 20
      %v884 = vpop.permute.xlu0 %883
      %885 = vrot.lane.b32.xlu0 %v854, 20
      %v886 = vpop.permute.xlu0 %885
      %v889 = vunpack.c.l.b16 %v245
      %v890 = vunpack.c.l.b16 %v246
      %v891 = vpack.c.b16 %v890, %v889
      %892 = vrot.lane.b32.xlu0 %v349, 24
      %v893 = vpop.permute.xlu0 %892
      %894 = vrot.lane.b32.xlu0 %v350, 24
      %v895 = vpop.permute.xlu0 %894
      %896 = vrot.lane.b32.xlu0 %v351, 24
      %v897 = vpop.permute.xlu0 %896
      %898 = vrot.lane.b32.xlu0 %v352, 24
      %v899 = vpop.permute.xlu0 %898
      %900 = vrot.lane.b32.xlu0 %v353, 24
      %v901 = vpop.permute.xlu0 %900
      %902 = vrot.lane.b32.xlu0 %v354, 24
      %v903 = vpop.permute.xlu0 %902
      %904 = vrot.lane.b32.xlu0 %v355, 24
      %v905 = vpop.permute.xlu0 %904
      %906 = vrot.lane.b32.xlu0 %v356, 24
      %v907 = vpop.permute.xlu0 %906
      %908 = vrot.lane.b32.xlu0 %v357, 24
      %v909 = vpop.permute.xlu0 %908
      %910 = vrot.lane.b32.xlu0 %v358, 24
      %v911 = vpop.permute.xlu0 %910
      %912 = vrot.lane.b32.xlu0 %v359, 24
      %v913 = vpop.permute.xlu0 %912
      %914 = vrot.lane.b32.xlu0 %v360, 24
      %v915 = vpop.permute.xlu0 %914
      %916 = vrot.lane.b32.xlu0 %v361, 24
      %v917 = vpop.permute.xlu0 %916
      %918 = vrot.lane.b32.xlu0 %v362, 24
      %v919 = vpop.permute.xlu0 %918
      %920 = vrot.lane.b32.xlu0 %v769, 24
      %v921 = vpop.permute.xlu0 %920
      %922 = vrot.lane.b32.xlu0 %v891, 24
      %v923 = vpop.permute.xlu0 %922
      %v925 = vunpack.c.l.b16 %v264
      %v926 = vpack.c.b16 %v925, %v925
      %v928 = vshrl.u32 %v891, 16
      %v930 = vshll.u32 %v891, 16
      %v932 = vrot.slane %v930, 1
      %v933 = vor.u32 %v928, %v932
      %v935 = vshll.u32 %v926, 16
      %v937 = vrot.slane %v935, 1
      %v938 = vsel %vm411, %v933, %v937
      %939 = vrot.lane.b32.xlu0 %v447, 28
      %v940 = vpop.permute.xlu0 %939
      %941 = vrot.lane.b32.xlu0 %v459, 28
      %v942 = vpop.permute.xlu0 %941
      %943 = vrot.lane.b32.xlu0 %v471, 28
      %v944 = vpop.permute.xlu0 %943
      %945 = vrot.lane.b32.xlu0 %v483, 28
      %v946 = vpop.permute.xlu0 %945
      %947 = vrot.lane.b32.xlu0 %v495, 28
      %v948 = vpop.permute.xlu0 %947
      %949 = vrot.lane.b32.xlu0 %v507, 28
      %v950 = vpop.permute.xlu0 %949
      %951 = vrot.lane.b32.xlu0 %v519, 28
      %v952 = vpop.permute.xlu0 %951
      %953 = vrot.lane.b32.xlu0 %v531, 28
      %v954 = vpop.permute.xlu0 %953
      %955 = vrot.lane.b32.xlu0 %v543, 28
      %v956 = vpop.permute.xlu0 %955
      %957 = vrot.lane.b32.xlu0 %v555, 28
      %v958 = vpop.permute.xlu0 %957
      %959 = vrot.lane.b32.xlu0 %v567, 28
      %v960 = vpop.permute.xlu0 %959
      %961 = vrot.lane.b32.xlu0 %v579, 28
      %v962 = vpop.permute.xlu0 %961
      %963 = vrot.lane.b32.xlu0 %v591, 28
      %v964 = vpop.permute.xlu0 %963
      %965 = vrot.lane.b32.xlu0 %v603, 28
      %v966 = vpop.permute.xlu0 %965
      %967 = vrot.lane.b32.xlu0 %v816, 28
      %v968 = vpop.permute.xlu0 %967
      %969 = vrot.lane.b32.xlu0 %v938, 28
      %v970 = vpop.permute.xlu0 %969
      %v972 = vunpack.c.l.b16 %v282
      %v973 = vpack.c.b16 %v890, %v972
      %v974 = vrot.slane %v973, 1
      %v975 = vrot.slane %v926, 1
      %v976 = vsel %vm684, %v974, %v975
      %977 = vrot.lane.b32.xlu0 %v693, 32
      %v978 = vpop.permute.xlu0 %977
      %979 = vrot.lane.b32.xlu0 %v696, 32
      %v980 = vpop.permute.xlu0 %979
      %981 = vrot.lane.b32.xlu0 %v699, 32
      %v982 = vpop.permute.xlu0 %981
      %983 = vrot.lane.b32.xlu0 %v702, 32
      %v984 = vpop.permute.xlu0 %983
      %985 = vrot.lane.b32.xlu0 %v705, 32
      %v986 = vpop.permute.xlu0 %985
      %987 = vrot.lane.b32.xlu0 %v708, 32
      %v988 = vpop.permute.xlu0 %987
      %989 = vrot.lane.b32.xlu0 %v711, 32
      %v990 = vpop.permute.xlu0 %989
      %991 = vrot.lane.b32.xlu0 %v714, 32
      %v992 = vpop.permute.xlu0 %991
      %993 = vrot.lane.b32.xlu0 %v717, 32
      %v994 = vpop.permute.xlu0 %993
      %995 = vrot.lane.b32.xlu0 %v720, 32
      %v996 = vpop.permute.xlu0 %995
      %997 = vrot.lane.b32.xlu0 %v723, 32
      %v998 = vpop.permute.xlu0 %997
      %999 = vrot.lane.b32.xlu0 %v726, 32
      %v1000 = vpop.permute.xlu0 %999
      %1001 = vrot.lane.b32.xlu0 %v729, 32
      %v1002 = vpop.permute.xlu0 %1001
      %1003 = vrot.lane.b32.xlu0 %v732, 32
      %v1004 = vpop.permute.xlu0 %1003
      %1005 = vrot.lane.b32.xlu0 %v854, 32
      %v1006 = vpop.permute.xlu0 %1005
      %1007 = vrot.lane.b32.xlu0 %v976, 32
      %v1008 = vpop.permute.xlu0 %1007
      %vm1009 = vcmask 31744
      %v1011 = vsel %vm1009, %v347, %v605
      %v1013 = vsel %vm1009, %v348, %v607
      %v1015 = vsel %vm1009, %v349, %v609
      %v1017 = vsel %vm1009, %v350, %v611
      %v1019 = vsel %vm1009, %v351, %v613
      %v1021 = vsel %vm1009, %v352, %v615
      %v1023 = vsel %vm1009, %v353, %v617
      %v1025 = vsel %vm1009, %v354, %v619
      %v1027 = vsel %vm1009, %v355, %v621
      %v1029 = vsel %vm1009, %v356, %v623
      %v1031 = vsel %vm1009, %v357, %v625
      %v1033 = vsel %vm1009, %v358, %v627
      %v1035 = vsel %vm1009, %v359, %v629
      %v1037 = vsel %vm1009, %v360, %v631
      %v1039 = vsel %vm1009, %v361, %v633
      %v1041 = vsel %vm1009, %v362, %v635
      %vm1042 = vcmask 64512
      %v1044 = vsel %vm1042, %v1011, %v734
      %v1046 = vsel %vm1042, %v1013, %v736
      %v1048 = vsel %vm1042, %v1015, %v738
      %v1050 = vsel %vm1042, %v1017, %v740
      %v1052 = vsel %vm1042, %v1019, %v742
      %v1054 = vsel %vm1042, %v1021, %v744
      %v1056 = vsel %vm1042, %v1023, %v746
      %v1058 = vsel %vm1042, %v1025, %v748
      %v1060 = vsel %vm1042, %v1027, %v750
      %v1062 = vsel %vm1042, %v1029, %v752
      %v1064 = vsel %vm1042, %v1031, %v754
      %v1066 = vsel %vm1042, %v1033, %v756
      %v1068 = vsel %vm1042, %v1035, %v758
      %v1070 = vsel %vm1042, %v1037, %v760
      %v1072 = vsel %vm1042, %v1039, %v762
      %v1074 = vsel %vm1042, %v1041, %v764
      %vm1075 = vcmask 97280
      %v1077 = vsel %vm1075, %v1044, %v771
      %v1079 = vsel %vm1075, %v1046, %v773
      %v1081 = vsel %vm1075, %v1048, %v775
      %v1083 = vsel %vm1075, %v1050, %v777
      %v1085 = vsel %vm1075, %v1052, %v779
      %v1087 = vsel %vm1075, %v1054, %v781
      %v1089 = vsel %vm1075, %v1056, %v783
      %v1091 = vsel %vm1075, %v1058, %v785
      %v1093 = vsel %vm1075, %v1060, %v787
      %v1095 = vsel %vm1075, %v1062, %v789
      %v1097 = vsel %vm1075, %v1064, %v791
      %v1099 = vsel %vm1075, %v1066, %v793
      %v1101 = vsel %vm1075, %v1068, %v795
      %v1103 = vsel %vm1075, %v1070, %v797
      %v1105 = vsel %vm1075, %v1072, %v799
      %v1107 = vsel %vm1075, %v1074, %v801
      %vm1108 = vcmask 130048
      %v1110 = vsel %vm1108, %v1077, %v818
      %v1112 = vsel %vm1108, %v1079, %v820
      %v1114 = vsel %vm1108, %v1081, %v822
      %v1116 = vsel %vm1108, %v1083, %v824
      %v1118 = vsel %vm1108, %v1085, %v826
      %v1120 = vsel %vm1108, %v1087, %v828
      %v1122 = vsel %vm1108, %v1089, %v830
      %v1124 = vsel %vm1108, %v1091, %v832
      %v1126 = vsel %vm1108, %v1093, %v834
      %v1128 = vsel %vm1108, %v1095, %v836
      %v1130 = vsel %vm1108, %v1097, %v838
      %v1132 = vsel %vm1108, %v1099, %v840
      %v1134 = vsel %vm1108, %v1101, %v842
      %v1136 = vsel %vm1108, %v1103, %v844
      %v1138 = vsel %vm1108, %v1105, %v846
      %v1140 = vsel %vm1108, %v1107, %v848
      %vm1141 = vcmask 162816
      %v1143 = vsel %vm1141, %v1110, %v856
      %v1145 = vsel %vm1141, %v1112, %v858
      %v1147 = vsel %vm1141, %v1114, %v860
      %v1149 = vsel %vm1141, %v1116, %v862
      %v1151 = vsel %vm1141, %v1118, %v864
      %v1153 = vsel %vm1141, %v1120, %v866
      %v1155 = vsel %vm1141, %v1122, %v868
      %v1157 = vsel %vm1141, %v1124, %v870
      %v1159 = vsel %vm1141, %v1126, %v872
      %v1161 = vsel %vm1141, %v1128, %v874
      %v1163 = vsel %vm1141, %v1130, %v876
      %v1165 = vsel %vm1141, %v1132, %v878
      %v1167 = vsel %vm1141, %v1134, %v880
      %v1169 = vsel %vm1141, %v1136, %v882
      %v1171 = vsel %vm1141, %v1138, %v884
      %v1173 = vsel %vm1141, %v1140, %v886
      %vm1174 = vcmask 195584
      %v1176 = vsel %vm1174, %v1143, %v893
      %v1178 = vsel %vm1174, %v1145, %v895
      %v1180 = vsel %vm1174, %v1147, %v897
      %v1182 = vsel %vm1174, %v1149, %v899
      %v1184 = vsel %vm1174, %v1151, %v901
      %v1186 = vsel %vm1174, %v1153, %v903
      %v1188 = vsel %vm1174, %v1155, %v905
      %v1190 = vsel %vm1174, %v1157, %v907
      %v1192 = vsel %vm1174, %v1159, %v909
      %v1194 = vsel %vm1174, %v1161, %v911
      %v1196 = vsel %vm1174, %v1163, %v913
      %v1198 = vsel %vm1174, %v1165, %v915
      %v1200 = vsel %vm1174, %v1167, %v917
      %v1202 = vsel %vm1174, %v1169, %v919
      %v1204 = vsel %vm1174, %v1171, %v921
      %v1206 = vsel %vm1174, %v1173, %v923
      %vm1207 = vcmask 228352
      %v1209 = vsel %vm1207, %v1176, %v940
      %v1211 = vsel %vm1207, %v1178, %v942
      %v1213 = vsel %vm1207, %v1180, %v944
      %v1215 = vsel %vm1207, %v1182, %v946
      %v1217 = vsel %vm1207, %v1184, %v948
      %v1219 = vsel %vm1207, %v1186, %v950
      %v1221 = vsel %vm1207, %v1188, %v952
      %v1223 = vsel %vm1207, %v1190, %v954
      %v1225 = vsel %vm1207, %v1192, %v956
      %v1227 = vsel %vm1207, %v1194, %v958
      %v1229 = vsel %vm1207, %v1196, %v960
      %v1231 = vsel %vm1207, %v1198, %v962
      %v1233 = vsel %vm1207, %v1200, %v964
      %v1235 = vsel %vm1207, %v1202, %v966
      %v1237 = vsel %vm1207, %v1204, %v968
      %v1239 = vsel %vm1207, %v1206, %v970
      %vm1240 = vcmask 261120
      %v1242 = vsel %vm1240, %v1209, %v978
      %v1244 = vsel %vm1240, %v1211, %v980
      %v1246 = vsel %vm1240, %v1213, %v982
      %v1248 = vsel %vm1240, %v1215, %v984
      %v1250 = vsel %vm1240, %v1217, %v986
      %v1252 = vsel %vm1240, %v1219, %v988
      %v1254 = vsel %vm1240, %v1221, %v990
      %v1256 = vsel %vm1240, %v1223, %v992
      %v1258 = vsel %vm1240, %v1225, %v994
      %v1260 = vsel %vm1240, %v1227, %v996
      %v1262 = vsel %vm1240, %v1229, %v998
      %v1264 = vsel %vm1240, %v1231, %v1000
      %v1266 = vsel %vm1240, %v1233, %v1002
      %v1268 = vsel %vm1240, %v1235, %v1004
      %v1270 = vsel %vm1240, %v1237, %v1006
      %v1272 = vsel %vm1240, %v1239, %v1008
      %v1273 = vld [vmem:[%s1] sm:$0xf]
      %v1274 = vld [vmem:[%s1 + $0x4] sm:$0xf]
      %v1275 = vld [vmem:[%s1 + $0x8] sm:$0xf]
      %v1276 = vld [vmem:[%s1 + $0xc] sm:$0xf]
      %v1277 = vld [vmem:[%s1 + $0x10] sm:$0x3]
      %v1278 = vld [vmem:[%s2] sm:$0x1]
      %v1280 = vperm.slane %v1278, 0
      %v1287 = vunpack.c.l.b16 %v1273
      %v1288 = vunpack.c.l.b16 %v1274
      %v1289 = vunpack.c.l.b16 %v1275
      %v1290 = vunpack.c.l.b16 %v1276
      %v1291 = vunpack.c.l.b16 %v1277
      %v1292 = vpack.c.b16 %v1288, %v1287
      %v1293 = vpack.c.b16 %v1290, %v1289
      %v1294 = vpack.c.b16 %v1291, %v1291
      %vm1297 = vcmask 293888
      %v1298 = vsel %vm1297, %v1242, 0
      %v1300 = vsel %vm1297, %v1244, 0
      %v1302 = vsel %vm1297, %v1246, 0
      %v1304 = vsel %vm1297, %v1248, 0
      %v1306 = vsel %vm1297, %v1250, 0
      %v1308 = vsel %vm1297, %v1252, 0
      %v1310 = vsel %vm1297, %v1254, 0
      %v1312 = vsel %vm1297, %v1256, 0
      %v1314 = vsel %vm1297, %v1258, 0
      %v1316 = vsel %vm1297, %v1260, 0
      %v1318 = vsel %vm1297, %v1262, 0
      %v1320 = vsel %vm1297, %v1264, 0
      %v1322 = vsel %vm1297, %v1266, 0
      %v1324 = vsel %vm1297, %v1268, 0
      %v1326 = vsel %vm1297, %v1270, 0
      %v1328 = vsel %vm1297, %v1272, 0
      %vm1330 = vcmask 1041408
      %v1332 = vsel %vm1330, %v1294, 0
      %1334 = vmatpush.bf16.msra.mxu0 0
      %1335 = vmatpush.bf16.msra.mxu0 0
      %1336 = vmatpush.bf16.msra.mxu0 0
      %1337 = vmatpush.bf16.msra.mxu0 0
      %1338 = vmatpush.bf16.msra.mxu0 0
      %1339 = vmatpush.bf16.msra.mxu0 %v1332
      %1340 = vmatpush.bf16.msra.mxu0 %v1293
      %1341 = vmatpush.bf16.msra.mxu0 %v1292
      %1342 = vmatmul.bf16.gmra.mxu0 %v1298
      %v1343 = vpop.f32.mrf.mxu0
      %v1344 = vadd.f32 %v1280, %v1343
      %v1345 = vpop.f32.mrf.mxu0
      %v1346 = vadd.f32 %v1280, %v1345
      %1347 = vmatmul.bf16.gmra.mxu0 %v1300
      %v1348 = vpop.f32.mrf.mxu0
      %v1349 = vadd.f32 %v1280, %v1348
      %v1350 = vpop.f32.mrf.mxu0
      %v1351 = vadd.f32 %v1280, %v1350
      %1352 = vmatmul.bf16.gmra.mxu0 %v1302
      %v1353 = vpop.f32.mrf.mxu0
      %v1354 = vadd.f32 %v1280, %v1353
      %v1355 = vpop.f32.mrf.mxu0
      %v1356 = vadd.f32 %v1280, %v1355
      %1357 = vmatmul.bf16.gmra.mxu0 %v1304
      %v1358 = vpop.f32.mrf.mxu0
      %v1359 = vadd.f32 %v1280, %v1358
      %v1360 = vpop.f32.mrf.mxu0
      %v1361 = vadd.f32 %v1280, %v1360
      %1362 = vmatmul.bf16.gmra.mxu0 %v1306
      %v1363 = vpop.f32.mrf.mxu0
      %v1364 = vadd.f32 %v1280, %v1363
      %v1365 = vpop.f32.mrf.mxu0
      %v1366 = vadd.f32 %v1280, %v1365
      %1367 = vmatmul.bf16.gmra.mxu0 %v1308
      %v1368 = vpop.f32.mrf.mxu0
      %v1369 = vadd.f32 %v1280, %v1368
      %v1370 = vpop.f32.mrf.mxu0
      %v1371 = vadd.f32 %v1280, %v1370
      %1372 = vmatmul.bf16.gmra.mxu0 %v1310
      %v1373 = vpop.f32.mrf.mxu0
      %v1374 = vadd.f32 %v1280, %v1373
      %v1375 = vpop.f32.mrf.mxu0
      %v1376 = vadd.f32 %v1280, %v1375
      %1377 = vmatmul.bf16.gmra.mxu0 %v1312
      %v1378 = vpop.f32.mrf.mxu0
      %v1379 = vadd.f32 %v1280, %v1378
      %v1380 = vpop.f32.mrf.mxu0
      %v1381 = vadd.f32 %v1280, %v1380
      %1382 = vmatmul.bf16.gmra.mxu0 %v1314
      %v1383 = vpop.f32.mrf.mxu0
      %v1384 = vadd.f32 %v1280, %v1383
      %v1385 = vpop.f32.mrf.mxu0
      %v1386 = vadd.f32 %v1280, %v1385
      %1387 = vmatmul.bf16.gmra.mxu0 %v1316
      %v1388 = vpop.f32.mrf.mxu0
      %v1389 = vadd.f32 %v1280, %v1388
      %v1390 = vpop.f32.mrf.mxu0
      %v1391 = vadd.f32 %v1280, %v1390
      %1392 = vmatmul.bf16.gmra.mxu0 %v1318
      %v1393 = vpop.f32.mrf.mxu0
      %v1394 = vadd.f32 %v1280, %v1393
      %v1395 = vpop.f32.mrf.mxu0
      %v1396 = vadd.f32 %v1280, %v1395
      %1397 = vmatmul.bf16.gmra.mxu0 %v1320
      %v1398 = vpop.f32.mrf.mxu0
      %v1399 = vadd.f32 %v1280, %v1398
      %v1400 = vpop.f32.mrf.mxu0
      %v1401 = vadd.f32 %v1280, %v1400
      %1402 = vmatmul.bf16.gmra.mxu0 %v1322
      %v1403 = vpop.f32.mrf.mxu0
      %v1404 = vadd.f32 %v1280, %v1403
      %v1405 = vpop.f32.mrf.mxu0
      %v1406 = vadd.f32 %v1280, %v1405
      %1407 = vmatmul.bf16.gmra.mxu0 %v1324
      %v1408 = vpop.f32.mrf.mxu0
      %v1409 = vadd.f32 %v1280, %v1408
      %v1410 = vpop.f32.mrf.mxu0
      %v1411 = vadd.f32 %v1280, %v1410
      %1412 = vmatmul.bf16.gmra.mxu0 %v1326
      %v1413 = vpop.f32.mrf.mxu0
      %v1414 = vadd.f32 %v1280, %v1413
      %v1415 = vpop.f32.mrf.mxu0
      %v1416 = vadd.f32 %v1280, %v1415
      %1417 = vmatmul.bf16.gmra.mxu0 %v1328
      %v1418 = vpop.f32.mrf.mxu0
      %v1419 = vadd.f32 %v1280, %v1418
      %v1420 = vpop.f32.mrf.mxu0
      %v1421 = vadd.f32 %v1280, %v1420
      %1422 = vdwg.mxu0
      %1423 = vst.msk [vmem:[%s208] sm:$0xff] %vm1042, %v1344
      %1424 = vst.msk [vmem:[%s208 + $0x8] sm:$0xff] %vm1042, %v1346
      %1425 = vst.msk [vmem:[%s208 + $0x10] sm:$0xff] %vm1042, %v1349
      %1426 = vst.msk [vmem:[%s208 + $0x18] sm:$0xff] %vm1042, %v1351
      %1427 = vst.msk [vmem:[%s208 + $0x20] sm:$0xff] %vm1042, %v1354
      %1428 = vst.msk [vmem:[%s208 + $0x28] sm:$0xff] %vm1042, %v1356
      %1429 = vst.msk [vmem:[%s208 + $0x30] sm:$0xff] %vm1042, %v1359
      %1430 = vst.msk [vmem:[%s208 + $0x38] sm:$0xff] %vm1042, %v1361
      %1431 = vst.msk [vmem:[%s208 + $0x40] sm:$0xff] %vm1042, %v1364
      %1432 = vst.msk [vmem:[%s208 + $0x48] sm:$0xff] %vm1042, %v1366
      %1433 = vst.msk [vmem:[%s208 + $0x50] sm:$0xff] %vm1042, %v1369
      %1434 = vst.msk [vmem:[%s208 + $0x58] sm:$0xff] %vm1042, %v1371
      %1435 = vst.msk [vmem:[%s208 + $0x60] sm:$0xff] %vm1042, %v1374
      %1436 = vst.msk [vmem:[%s208 + $0x68] sm:$0xff] %vm1042, %v1376
      %1437 = vst.msk [vmem:[%s208 + $0x70] sm:$0xff] %vm1042, %v1379
      %1438 = vst.msk [vmem:[%s208 + $0x78] sm:$0xff] %vm1042, %v1381
      %1439 = vst.msk [vmem:[%s208 + $0x80] sm:$0xff] %vm1042, %v1384
      %1440 = vst.msk [vmem:[%s208 + $0x88] sm:$0xff] %vm1042, %v1386
      %1441 = vst.msk [vmem:[%s208 + $0x90] sm:$0xff] %vm1042, %v1389
      %1442 = vst.msk [vmem:[%s208 + $0x98] sm:$0xff] %vm1042, %v1391
      %1443 = vst.msk [vmem:[%s208 + $0xa0] sm:$0xff] %vm1042, %v1394
      %1444 = vst.msk [vmem:[%s208 + $0xa8] sm:$0xff] %vm1042, %v1396
      %1445 = vst.msk [vmem:[%s208 + $0xb0] sm:$0xff] %vm1042, %v1399
      %1446 = vst.msk [vmem:[%s208 + $0xb8] sm:$0xff] %vm1042, %v1401
      %1447 = vst.msk [vmem:[%s208 + $0xc0] sm:$0xff] %vm1042, %v1404
      %1448 = vst.msk [vmem:[%s208 + $0xc8] sm:$0xff] %vm1042, %v1406
      %1449 = vst.msk [vmem:[%s208 + $0xd0] sm:$0xff] %vm1042, %v1409
      %1450 = vst.msk [vmem:[%s208 + $0xd8] sm:$0xff] %vm1042, %v1411
      %1451 = vst.msk [vmem:[%s208 + $0xe0] sm:$0xff] %vm1042, %v1414
      %1452 = vst.msk [vmem:[%s208 + $0xe8] sm:$0xff] %vm1042, %v1416
      %1453 = vst.msk [vmem:[%s208 + $0xf0] sm:$0xff] %vm1042, %v1419
      %1454 = vst.msk [vmem:[%s208 + $0xf8] sm:$0xff] %vm1042, %v1421
      %s1455 = smul.u32 16, %s19
      %p1456 = scmp.lt.s32.totalorder %s18, 1
      %s1457 = scalar_select %p1456, %s18, 1
      %p1458 = scmp.lt.s32.totalorder %s1455, 15
      %s1459 = scalar_select %p1458, %s1455, 15
      %s1460 = smul.addr %s1459, 2
      %s1461 = smul.addr %s1457, 32
      %s1462 = sadd.s32 %s1460, %s1461
      %s1463 = smul.addr %s1462, 8
      %s1464 = scalar_lea.vmem %s3, %s1463
      // Predicated region
      $region33: #{tpu_custom_call.1} parent=31 // pred_check
        %p1465 = pneg %p116
      $region34: #{tpu_custom_call.1} parent=31 // pred_check_branch
        %1467 = sbr.rel (%p1465) target = $region36
      $region35: #{tpu_custom_call.1} parent=31 // pred_region
        %s1468 = smul.u32 16, %s19
      $region36: #{tpu_custom_call.1} parent=31 // pred_fallthru
        _
    $region32: #{tpu_custom_call.1} parent=5 // pred_fallthru
      _
    %p1469 = scmp.le.s32.totalorder 2, %s9
    // Predicated region
    $region37: #{tpu_custom_call.1} parent=5 // pred_check
      %p1470 = pneg %p1469
    $region38: #{tpu_custom_call.1} parent=5 // pred_check_branch
      %1472 = sbr.rel (%p1470) target = $region40
    $region39: #{tpu_custom_call.1} parent=5 // pred_region
      %s1473 = ssub.s32 %s9, 2
      // Predicated region
      $region41: #{tpu_custom_call.1} parent=39 // pred_check
        %p1474 = pneg %p122
      $region42: #{tpu_custom_call.1} parent=39 // pred_check_branch
        %1476 = sbr.rel (%p1474) target = $region44
      $region43: #{tpu_custom_call.1} parent=39 // pred_region
        %s1477 = smul.u32 16, %s21
        %p1478 = scmp.lt.s32.totalorder %s20, 1
        %s1479 = scalar_select %p1478, %s20, 1
        %p1480 = scmp.lt.s32.totalorder %s1477, 15
        %s1481 = scalar_select %p1480, %s1477, 15
        %s1482 = smul.addr %s1481, 2
        %s1483 = smul.addr %s1479, 32
        %s1484 = sadd.s32 %s1482, %s1483
        %s1485 = smul.addr %s1484, 8
        %s1486 = scalar_lea.vmem %s3, %s1485
      $region44: #{tpu_custom_call.1} parent=39 // pred_fallthru
        _
    $region40: #{tpu_custom_call.1} parent=5 // pred_fallthru
      _
  $region6: #{tpu_custom_call.1} parent=0 // loop_footer
    %s13 = sadd.s32 1, %s9
  $region7: #{tpu_custom_call.1} parent=0 // loop_footer_branch
    %8 = sbr.rel target = $region3
  $region8: #{tpu_custom_call.1} parent=0 // loop_exit
    _

</llo_original>
